<compile_context>
chip_gen: v7x
topology: tpu7x:2x2x1
jax: 0.10.0
libtpu: 0.0.40
codegen_flags: <defaults>
</compile_context>

<pallas_src>
import functools

import jax
import jax.numpy as jnp
from jax import lax
from jax.experimental import pallas as pl
from jax.experimental.pallas import tpu as pltpu


def _round_up(a, b):
    return (a + b - 1) // b * b


def _block_spec(shape, index_map, single_buffer=False):
    """BlockSpec helper; single_buffer drops the dead second pipeline buffer
    for blocks whose index_map is constant across the grid."""
    if single_buffer and hasattr(pl, "Buffered"):
        try:
            return pl.BlockSpec(shape, index_map, pipeline_mode=pl.Buffered(1))
        except TypeError:  # older BlockSpec signature without pipeline_mode
            pass
    return pl.BlockSpec(shape, index_map)


# ----------------------------------------------------------------------------
# Pallas kernel: (x*mask)_patches @ W (Kd-tiled, f32 accumulation) with a fused
# ratio / bias epilogue, stored in bf16.
# ----------------------------------------------------------------------------
def _partial_conv_kernel(xp_ref, ms_ref, w_ref, b_ref, out_ref, acc_ref, *,
                         window_size):
    # xp_ref : (tm, tk)     bf16  pre-masked im2col patches of x
    # ms_ref : (tm, 1)      f32   precomputed mask window-sum column
    # w_ref  : (tk, N_pad)  bf16  conv weight slab (zero-padded cols >= C_out)
    # b_ref  : (1, N_pad)   f32   bias (zero-padded)
    # out_ref: (tm, N_pad)  bf16  scaled conv output
    # acc_ref: (tm, N_pad)  f32   VMEM accumulator scratch
    k = pl.program_id(1)

    @pl.when(k == 0)
    def _init():
        acc_ref[...] = jnp.zeros_like(acc_ref)

    acc_ref[...] += jnp.dot(xp_ref[...], w_ref[...],
                            preferred_element_type=jnp.float32)     # MXU

    @pl.when(k == pl.num_programs(1) - 1)
    def _finalize():
        # ratio = window_size / (mask_sum + 1e-8); EUP reciprocal (free slot).
        ratio = window_size * pl.reciprocal(ms_ref[...] + 1e-8, approx=True)
        out_ref[...] = (acc_ref[...] * ratio + b_ref[...]).astype(out_ref.dtype)


# ----------------------------------------------------------------------------
# im2col glue (plain JAX): NCHW -> (B*H_out*W_out, C*K*K), C major then kh,kw
# ----------------------------------------------------------------------------
def _im2col(x, kernel_size, stride, padding):
    B, C, H, W = x.shape
    K = kernel_size
    xp = jnp.pad(x, ((0, 0), (0, 0), (padding, padding), (padding, padding)))
    H_out = (H + 2 * padding - K) // stride + 1
    W_out = (W + 2 * padding - K) // stride + 1
    cols = []
    for i in range(K):
        for j in range(K):
            cols.append(xp[:, :, i:i + stride * H_out:stride,
                              j:j + stride * W_out:stride])
    p = jnp.stack(cols, axis=2)                     # (B, C, K*K, H_out, W_out)
    p = p.reshape(B, C * K * K, H_out, W_out)
    p = p.transpose(0, 2, 3, 1).reshape(B * H_out * W_out, C * K * K)
    return p, H_out, W_out


# ----------------------------------------------------------------------------
# Wrapper: PartialConv2d.forward (multi_channel=False, groups=1, dilation=1)
# ----------------------------------------------------------------------------
def partial_conv2d(x, mask, weight, bias=None, *, kernel_size, stride=1,
                   padding=0, tm=1024):
    """x: (B,C_in,H,W); mask: (B,1,H,W) or (B,C_in,H,W);
    weight: (C_out,C_in,K,K); bias: (C_out,) or None.
    Returns (output (B,C_out,H_out,W_out), updated_mask (B,C_out,H_out,W_out))."""
    # TODO(synk): multi_channel=True, groups>1 and dilation>1 are not implemented.
    B, C_in, H, W = x.shape
    C_out = weight.shape[0]
    K = kernel_size
    Kd = C_in * K * K
    window_size = float(C_in * K * K)

    # Masked input; broadcasting a (B,1,H,W) mask across channels equals the
    # reference's mask.repeat(1, C_in, 1, 1) followed by x*mask.
    masked = (x * mask).astype(jnp.bfloat16)

    # Channel-summed mask: its K*K window sum equals mask_conv(mask) with the
    # all-ones (1, C_in, K, K) kernel of the reference module.
    if mask.shape[1] == 1:
        mask_csum = mask.astype(jnp.float32) * float(C_in)
    else:
        mask_csum = jnp.sum(mask.astype(jnp.float32), axis=1, keepdims=True)

    # Mask window sum via a cheap host-side 1-channel ones-conv (C_in-free).
    ones_w = jnp.ones((1, 1, K, K), jnp.float32)
    dn = lax.conv_dimension_numbers(mask_csum.shape, ones_w.shape,
                                    ("NCHW", "OIHW", "NCHW"))
    msum_hw = lax.conv_general_dilated(
        mask_csum, ones_w, (stride, stride),
        [(padding, padding), (padding, padding)], dimension_numbers=dn)

    # im2col of the masked input.
    x_patches, H_out, W_out = _im2col(masked, K, stride, padding)   # (M, Kd)
    M = B * H_out * W_out
    m_col = msum_hw.transpose(0, 2, 3, 1).reshape(M, 1)             # (M, 1) f32

    # ---- Generation-aware tile / VMEM budget ----
    try:
        vmem_cap = int(pltpu.get_tpu_info().vmem_capacity_bytes)
    except Exception:
        vmem_cap = 64 * 2**20            # conservative default (v7x per-core)
    budget = int(0.75 * vmem_cap)

    N_pad = _round_up(C_out, 128)

    # Kd tiling: keep the resident weight slab within ~1/3 of the budget.
    if Kd * N_pad * 2 <= budget // 3:
        tk, Kd_pad = Kd, Kd
    else:
        tk = 2048
        while tk > 256 and 2 * tk * N_pad * 2 > budget // 3:
            tk //= 2
        Kd_pad = _round_up(Kd, tk)
    nk = Kd_pad // tk
    w_bufs = 1 if nk == 1 else 2

    def vmem_need(tm_):
        return (2 * tm_ * tk * 2            # x-patch tiles (bf16, 2 buffers)
                + 2 * tm_ * 128 * 4         # mask-sum column (lane padded)
                + w_bufs * tk * N_pad * 2   # weight slab(s)
                + 2 * 8 * N_pad * 4         # bias
                + 2 * tm_ * N_pad * 2       # bf16 output tiles
                + tm_ * N_pad * 4)          # f32 accumulator scratch

    tm = max(16, _round_up(min(tm, _round_up(M, 16)), 16))
    while tm > 16 and vmem_need(tm) > budget:
        tm = max(16, _round_up(tm // 2, 16))
    # Keep >= 2 parallel grid steps so both v7x TensorCores get work.
    if M > 16 and pl.cdiv(M, tm) < 2:
        tm = max(16, _round_up(pl.cdiv(M, 2), 16))
    M_pad = _round_up(M, tm)

    # Pad operands (zero padding keeps the matmul exact).
    if M_pad != M or Kd_pad != Kd:
        x_patches = jnp.pad(x_patches, ((0, M_pad - M), (0, Kd_pad - Kd)))
    if M_pad != M:
        m_col = jnp.pad(m_col, ((0, M_pad - M), (0, 0)))

    w_mat = weight.reshape(C_out, Kd).T.astype(jnp.bfloat16)        # (Kd, C_out)
    w_mat = jnp.pad(w_mat, ((0, Kd_pad - Kd), (0, N_pad - C_out)))
    if bias is None:
        bias = jnp.zeros((C_out,), jnp.float32)
    b_mat = jnp.pad(bias.astype(jnp.float32).reshape(1, C_out),
                    ((0, 0), (0, N_pad - C_out)))

    kernel = functools.partial(_partial_conv_kernel, window_size=window_size)

    vmem_limit = int(min(vmem_cap * 9 // 10,
                         max(vmem_need(tm) * 3 // 2, 24 * 2**20)))

    out_flat = pl.pallas_call(
        kernel,
        out_shape=jax.ShapeDtypeStruct((M_pad, N_pad), jnp.bfloat16),
        grid_spec=pltpu.PrefetchScalarGridSpec(
            num_scalar_prefetch=0,
            grid=(M_pad // tm, nk),
            in_specs=[
                _block_spec((tm, tk), lambda i, k: (i, k)),          # x patches
                _block_spec((tm, 1), lambda i, k: (i, 0)),           # mask sum
                _block_spec((tk, N_pad), lambda i, k: (k, 0),
                            single_buffer=(nk == 1)),                # weight
                _block_spec((1, N_pad), lambda i, k: (0, 0),
                            single_buffer=True),                     # bias
            ],
            out_specs=pl.BlockSpec((tm, N_pad), lambda i, k: (i, 0)),
            scratch_shapes=[pltpu.VMEM((tm, N_pad), jnp.float32)],
        ),
        compiler_params=pltpu.CompilerParams(
            dimension_semantics=("parallel", "arbitrary"),
            vmem_limit_bytes=vmem_limit),
    )(x_patches, m_col, w_mat, b_mat)

    out = out_flat[:M, :C_out].reshape(B, H_out, W_out, C_out)
    out = out.transpose(0, 3, 1, 2).astype(x.dtype)

    # Updated mask: clamp of the window sum; broadcast to C_out for module
    # parity (consumers that accept (B,1,H,W) can use the 1-channel form).
    umask1 = jnp.clip(msum_hw, 0.0, 1.0)
    umask = jnp.broadcast_to(umask1, (B, C_out, H_out, W_out)).astype(mask.dtype)
    return out, umask


# ----------------------------------------------------------------------------
# Pure-JAX reference (mirrors the PyTorch forward).  Matmul operands are
# quantized to bf16 to match the kernel's MXU inputs; everything else f32.
# ----------------------------------------------------------------------------
def _reference(x, mask, weight, bias, *, kernel_size, stride, padding):
    B, C_in, H, W = x.shape
    C_out = weight.shape[0]
    K = kernel_size
    window_size = float(C_in * K * K)
    if mask.shape[1] == 1 and C_in > 1:
        mask = jnp.tile(mask, (1, C_in, 1, 1))
    masked_x = x * mask
    masked_q = masked_x.astype(jnp.bfloat16).astype(jnp.float32)
    weight_q = weight.astype(jnp.bfloat16).astype(jnp.float32)
    dn = lax.conv_dimension_numbers(x.shape, weight.shape, ("NCHW", "OIHW", "NCHW"))
    output = lax.conv_general_dilated(
        masked_q, weight_q, (stride, stride),
        [(padding, padding), (padding, padding)], dimension_numbers=dn)
    ones_w = jnp.ones((1, C_in, K, K), jnp.float32)
    updated_mask = lax.conv_general_dilated(
        mask, ones_w, (stride, stride),
        [(padding, padding), (padding, padding)], dimension_numbers=dn)
    ratio = window_size / (updated_mask + 1e-8)
    if bias is None:
        bias = jnp.zeros((C_out,), jnp.float32)
    output = output * ratio + bias.reshape(1, C_out, 1, 1)
    updated_mask = jnp.clip(updated_mask, 0.0, 1.0)
    updated_mask = jnp.tile(updated_mask, (1, C_out, 1, 1))
    return output, updated_mask


if __name__ == "__main__":
    key = jax.random.PRNGKey(0)

    # ---- Test 1: single-channel mask (broadcast path), stride 1, pad 1 ----
    B, C_in, C_out, H, W = 2, 4, 8, 16, 16
    K, stride, padding = 3, 1, 1
    k1, k2, k3, key = jax.random.split(key, 4)
    x = jax.random.normal(k1, (B, C_in, H, W), jnp.float32)
    mask = (jax.random.uniform(k2, (B, 1, H, W)) > 0.4).astype(jnp.float32)
    weight = 0.1 * jax.random.normal(k3, (C_out, C_in, K, K), jnp.float32)
    bias = jnp.zeros((C_out,), jnp.float32)   # module inits bias to zeros

    out, umask = partial_conv2d(x, mask, weight, bias, kernel_size=K,
                                stride=stride, padding=padding, tm=128)
    jax.block_until_ready(out)
    jax.block_until_ready(umask)
    out_ref, umask_ref = _reference(x, mask, weight, bias, kernel_size=K,
                                    stride=stride, padding=padding)
    assert out.shape == (B, C_out, H, W) and umask.shape == (B, C_out, H, W)
    assert jnp.allclose(out, out_ref, rtol=2e-2, atol=2e-2)
    assert jnp.allclose(umask, umask_ref, rtol=1e-5, atol=1e-5)

    # ---- Test 2: multi-channel mask, odd C_out, nonzero bias, row-padding ----
    B2, C_in2, C_out2, H2, W2 = 1, 3, 5, 9, 9
    K2, stride2, padding2 = 3, 1, 0            # H_out = W_out = 7 -> M = 49
    k1, k2, k3, k4, key = jax.random.split(key, 5)
    x2 = jax.random.normal(k1, (B2, C_in2, H2, W2), jnp.float32)
    mask2 = (jax.random.uniform(k2, (B2, C_in2, H2, W2)) > 0.5).astype(jnp.float32)
    weight2 = 0.1 * jax.random.normal(k3, (C_out2, C_in2, K2, K2), jnp.float32)
    bias2 = 0.1 * jax.random.normal(k4, (C_out2,), jnp.float32)

    out2, umask2 = partial_conv2d(x2, mask2, weight2, bias2, kernel_size=K2,
                                  stride=stride2, padding=padding2, tm=32)
    jax.block_until_ready(out2)
    jax.block_until_ready(umask2)
    out2_ref, umask2_ref = _reference(x2, mask2, weight2, bias2, kernel_size=K2,
                                      stride=stride2, padding=padding2)
    assert out2.shape == (B2, C_out2, 7, 7) and umask2.shape == (B2, C_out2, 7, 7)
    assert jnp.allclose(out2, out2_ref, rtol=2e-2, atol=2e-2)
    assert jnp.allclose(umask2, umask2_ref, rtol=1e-5, atol=1e-5)

    print("KERNEL_OK")
</pallas_src>

<mosaic_0001>
module attributes {stable_mosaic.version = 11 : i64} {
  func.func @_partial_conv_kernel(%arg0: i32, %arg1: i32, %arg2: memref<128x36xbf16, #tpu.memory_space<vmem>>, %arg3: memref<128x1xf32, #tpu.memory_space<vmem>>, %arg4: memref<36x128xbf16, #tpu.memory_space<vmem>>, %arg5: memref<1x128xf32, #tpu.memory_space<vmem>>, %arg6: memref<128x128xbf16, #tpu.memory_space<vmem>>, %arg7: memref<128x128xf32, #tpu.memory_space<vmem>>) attributes {dimension_semantics = [#tpu.dimension_semantics<parallel>, #tpu.dimension_semantics<arbitrary>], iteration_bounds = array<i64: 4, 1>, scalar_prefetch = 0 : i64, scratch_operands = 1 : i64, tpu.core_type = #tpu.core_type<tc>, window_params = [{transform_indices = @transform_0, window_bounds = array<i64: 128, 36>}, {transform_indices = @transform_1, window_bounds = array<i64: 128, 1>}, {pipeline_mode = #tpu.pipeline_mode<synchronous>, transform_indices = @transform_2, window_bounds = array<i64: 36, 128>}, {pipeline_mode = #tpu.pipeline_mode<synchronous>, transform_indices = @transform_3, window_bounds = array<i64: 1, 128>}, {transform_indices = @transform_4, window_bounds = array<i64: 128, 128>}]} {
    %c0_i32 = arith.constant 0 : i32
    %0 = arith.cmpi eq, %arg1, %c0_i32 : i32
    %1 = arith.extui %0 : i1 to i32
    %c0_i32_0 = arith.constant 0 : i32
    %2 = arith.cmpi ne, %1, %c0_i32_0 : i32
    scf.if %2 {
      %cst_10 = arith.constant 0.000000e+00 : f32
      %12 = vector.broadcast %cst_10 : f32 to vector<128x128xf32>
      %c0_11 = arith.constant 0 : index
      %c0_12 = arith.constant 0 : index
      %13 = vector.load %arg7[%c0_11, %c0_12] : memref<128x128xf32, #tpu.memory_space<vmem>>, vector<128x128xf32>
      tpu.vector_store %arg7[%c0_11, %c0_12], %12 {strides = array<i32>} : memref<128x128xf32, #tpu.memory_space<vmem>>, vector<128x128xf32>,
    } else {
    }
    %c0 = arith.constant 0 : index
    %c0_1 = arith.constant 0 : index
    %3 = vector.load %arg7[%c0, %c0_1] : memref<128x128xf32, #tpu.memory_space<vmem>>, vector<128x128xf32>
    %c0_2 = arith.constant 0 : index
    %c0_3 = arith.constant 0 : index
    %4 = vector.load %arg2[%c0_2, %c0_3] : memref<128x36xbf16, #tpu.memory_space<vmem>>, vector<128x36xbf16>
    %c0_4 = arith.constant 0 : index
    %c0_5 = arith.constant 0 : index
    %5 = vector.load %arg4[%c0_4, %c0_5] : memref<36x128xbf16, #tpu.memory_space<vmem>>, vector<36x128xbf16>
    %cst = arith.constant dense<0.000000e+00> : vector<128x128xf32>
    %6 = tpu.matmul %4, %5, %cst {dimension_numbers = #tpu.dot_dimension_numbers<[1], [0], [0], [1], [0, 0, 1, 1], [], []>} : vector<128x36xbf16>, vector<36x128xbf16>, vector<128x128xf32> -> vector<128x128xf32>
    %7 = arith.addf %3, %6 : vector<128x128xf32>
    %c0_6 = arith.constant 0 : index
    %c0_7 = arith.constant 0 : index
    %8 = vector.load %arg7[%c0_6, %c0_7] : memref<128x128xf32, #tpu.memory_space<vmem>>, vector<128x128xf32>
    tpu.vector_store %arg7[%c0_6, %c0_7], %7 {strides = array<i32>} : memref<128x128xf32, #tpu.memory_space<vmem>>, vector<128x128xf32>,
    %c0_i32_8 = arith.constant 0 : i32
    %9 = arith.cmpi eq, %arg1, %c0_i32_8 : i32
    %10 = arith.extui %9 : i1 to i32
    %c0_i32_9 = arith.constant 0 : i32
    %11 = arith.cmpi ne, %10, %c0_i32_9 : i32
    scf.if %11 {
      %c0_10 = arith.constant 0 : index
      %c0_11 = arith.constant 0 : index
      %12 = vector.load %arg3[%c0_10, %c0_11] : memref<128x1xf32, #tpu.memory_space<vmem>>, vector<128x1xf32>
      %cst_12 = arith.constant 9.99999993E-9 : f32
      %13 = vector.broadcast %cst_12 : f32 to vector<128x1xf32>
      %14 = arith.addf %12, %13 : vector<128x1xf32>
      %15 = tpu.reciprocal %14 {approx = true} : vector<128x1xf32> -> vector<128x1xf32>
      %cst_13 = arith.constant 3.600000e+01 : f32
      %16 = vector.broadcast %cst_13 : f32 to vector<128x1xf32>
      %17 = arith.mulf %16, %15 : vector<128x1xf32>
      %c0_14 = arith.constant 0 : index
      %c0_15 = arith.constant 0 : index
      %18 = vector.load %arg7[%c0_14, %c0_15] : memref<128x128xf32, #tpu.memory_space<vmem>>, vector<128x128xf32>
      %19 = vector.broadcast %17 : vector<128x1xf32> to vector<128x128xf32>
      %20 = arith.mulf %18, %19 : vector<128x128xf32>
      %c0_16 = arith.constant 0 : index
      %c0_17 = arith.constant 0 : index
      %21 = vector.load %arg5[%c0_16, %c0_17] : memref<1x128xf32, #tpu.memory_space<vmem>>, vector<1x128xf32>
      %22 = vector.broadcast %21 : vector<1x128xf32> to vector<128x128xf32>
      %23 = arith.addf %20, %22 : vector<128x128xf32>
      %24 = arith.truncf %23 : vector<128x128xf32> to vector<128x128xbf16>
      %c0_18 = arith.constant 0 : index
      %c0_19 = arith.constant 0 : index
      %25 = vector.load %arg6[%c0_18, %c0_19] : memref<128x128xbf16, #tpu.memory_space<vmem>>, vector<128x128xbf16>
      tpu.vector_store %arg6[%c0_18, %c0_19], %24 {strides = array<i32>} : memref<128x128xbf16, #tpu.memory_space<vmem>>, vector<128x128xbf16>,
    } else {
    }
    return
  }
  func.func @transform_0(%arg0: i32, %arg1: i32) -> (i32, i32) {
    %c0_i32 = arith.constant 0 : i32
    return %arg0, %arg1 : i32, i32
  }
  func.func @transform_1(%arg0: i32, %arg1: i32) -> (i32, i32) {
    %c0_i32 = arith.constant 0 : i32
    %c0_i32_0 = arith.constant 0 : i32
    return %arg0, %c0_i32 : i32, i32
  }
  func.func @transform_2(%arg0: i32, %arg1: i32) -> (i32, i32) {
    %c0_i32 = arith.constant 0 : i32
    %c0_i32_0 = arith.constant 0 : i32
    return %arg1, %c0_i32 : i32, i32
  }
  func.func @transform_3(%arg0: i32, %arg1: i32) -> (i32, i32) {
    %c0_i32 = arith.constant 0 : i32
    %c0_i32_0 = arith.constant 0 : i32
    %c0_i32_1 = arith.constant 0 : i32
    return %c0_i32, %c0_i32_0 : i32, i32
  }
  func.func @transform_4(%arg0: i32, %arg1: i32) -> (i32, i32) {
    %c0_i32 = arith.constant 0 : i32
    %c0_i32_0 = arith.constant 0 : i32
    return %arg0, %c0_i32 : i32, i32
  }
}

</mosaic_0001>

<llo_original>
// kernel: tpu_custom_call.1
$region0: #{tpu_custom_call.1}
  #allocation0 [shape = 'u32[]', space=smem, size = 0x4, offset = 0x4, fixed_abs, tag = 'smem constant byte address 0x4 - core index']
  #allocation1 [shape = 'u32[144,128]{1,0:T(1,128)}', space=vmem, size = 0x12000, scoped, tag = 'internal scratch']
  #allocation2 [shape = 'f32[128,128]{1,0:T(8,128)}', space=vmem, size = 0x10000, scoped, tag = 'scratch operand']
  %s0 = inlined_call_operand.vmem [shape: bf16[512,36], index: 0, kind: input, shape index: {}]
  %s1 = inlined_call_operand.vmem [shape: f32[512,1], index: 1, kind: input, shape index: {}]
  %s2 = inlined_call_operand.vmem [shape: bf16[36,128], index: 2, kind: input, shape index: {}]
  %s3 = inlined_call_operand.vmem [shape: f32[1,128], index: 3, kind: input, shape index: {}]
  %s4 = inlined_call_operand.hbm [shape: bf16[512,128], index: 4, kind: output, shape index: {}]
  %s5 = sld [smem:[#allocation0]]
  $region57: #{tpu_custom_call.1} parent=0
    _
  %s7 = ssub.s32 1, %s5
  %s8 = scalar_select 0, %s7, %s5
  $region1: #{tpu_custom_call.1} parent=0
    #allocation3 [shape = 'u8[65536]{0}', space=vmem, size = 0x10000, scoped, tag = 'output window, operand 0']
    #allocation4 [shape = 's32[2]{0}', space=sflag, size = 0x8, scoped, tag = 'scoped memory for tpu_custom_call.1']
    %9 = vsyncpa [#allocation4], 0
    %s10 = scalar_lea.sflag [#allocation4], 1
    %11 = vsyncpa %s10, 0
    loop: start=0, step=1, limit=6
    $region2: #{tpu_custom_call.1} parent=1 // loop_pre_header
      _
    $region3: #{tpu_custom_call.1} parent=1 // loop_header
      %s13 = sphi 0, %s17
      %p14 = scmp.ge.s32.totalorder %s13, 6
      %s20 = sphi 0, %s32
      %s21 = sphi 0, %s28
      %s22 = sphi 0, %s20
      %s23 = sphi 0, %s21
      %s24 = sphi 0, %s22
      %s25 = sphi 0, %s23
      %s37 = sphi 0, %s39
      %s40 = sphi 0, %s37
      %s41 = sphi 0, %s40
      %s57 = sphi 0, %s41
      %s63 = sphi 0, %s65
      %s66 = sphi 0, %s63
      %s67 = sphi 0, %s66
      %s83 = sphi 0, %s67
      %s89 = sphi 0, %s91
      %s92 = sphi 0, %s89
      %s93 = sphi 0, %s92
      %s109 = sphi 0, %s93
      %s113 = sphi 0, %s113
      %s115 = sphi 0, %s113
      %s116 = sphi 0, %s115
      %s130 = sphi 0, %s116
      %s136 = sphi 0, %s138
      %s139 = sphi 0, %s136
      %s140 = sphi 0, %s139
      %s156 = sphi 0, %s140
    $region4: #{tpu_custom_call.1} parent=1 // loop_header_branch
      %16 = sbr.rel (%p14) target = $region8
    $region5: #{tpu_custom_call.1} parent=1 // loop_body
      %s18 = ssub.s32 %s13, 1
      %s19 = ssub.s32 %s13, 2
      %s26 = sadd.s32 1, %s21
      %p27 = scmp.ge.s32.totalorder %s26, 1
      %s28 = scalar_select %p27, 0, %s26
      %s29 = sadd.s32 1, %s20
      %s30 = scalar_select %p27, %s29, %s20
      %p31 = scmp.ge.s32.totalorder %s30, 4
      %s32 = scalar_select %p31, 0, %s30
      %s33 = ssub.s32 %s20, %s32
      %s34 = ssub.s32 %s21, %s28
      %s35 = sor.u32 %s33, %s34
      %p36 = scmp.eq.s32.totalorder %s35, 0
      %s38 = sadd.s32 %s37, 1
      %s39 = scalar_select %p36, %s37, %s38
      %p42 = pneg %p36
      %p43 = scmp.eq.s32.totalorder %s13, 3
      %p44 = por %p42, %p43
      %p45 = scmp.ne.s32.totalorder %s37, %s40
      %p46 = scmp.eq.s32.totalorder %s13, 0
      %p47 = por %p45, %p46
      %p48 = scmp.ne.s32.totalorder %s37, %s40
      %p49 = scmp.eq.s32.totalorder %s18, 3
      %p50 = por %p48, %p49
      %p51 = scmp.ne.s32.totalorder %s40, %s41
      %p52 = scmp.eq.s32.totalorder %s18, 0
      %p53 = por %p51, %p52
      %p54 = scmp.ne.s32.totalorder %s40, %s41
      %p55 = scmp.eq.s32.totalorder %s19, 3
      %p56 = por %p54, %p55
      %p58 = scmp.ne.s32.totalorder %s41, %s57
      %p59 = scmp.eq.s32.totalorder %s19, 0
      %p60 = por %p58, %p59
      %s61 = ssub.s32 %s20, %s32
      %p62 = scmp.eq.s32.totalorder %s61, 0
      %s64 = sadd.s32 %s63, 1
      %s65 = scalar_select %p62, %s63, %s64
      %p68 = pneg %p62
      %p69 = scmp.eq.s32.totalorder %s13, 3
      %p70 = por %p68, %p69
      %p71 = scmp.ne.s32.totalorder %s63, %s66
      %p72 = scmp.eq.s32.totalorder %s13, 0
      %p73 = por %p71, %p72
      %p74 = scmp.ne.s32.totalorder %s63, %s66
      %p75 = scmp.eq.s32.totalorder %s18, 3
      %p76 = por %p74, %p75
      %p77 = scmp.ne.s32.totalorder %s66, %s67
      %p78 = scmp.eq.s32.totalorder %s18, 0
      %p79 = por %p77, %p78
      %p80 = scmp.ne.s32.totalorder %s66, %s67
      %p81 = scmp.eq.s32.totalorder %s19, 3
      %p82 = por %p80, %p81
      %p84 = scmp.ne.s32.totalorder %s67, %s83
      %p85 = scmp.eq.s32.totalorder %s19, 0
      %p86 = por %p84, %p85
      %s87 = ssub.s32 %s21, %s28
      %p88 = scmp.eq.s32.totalorder %s87, 0
      %s90 = sadd.s32 %s89, 1
      %s91 = scalar_select %p88, %s89, %s90
      %p94 = pneg %p88
      %p95 = scmp.eq.s32.totalorder %s13, 3
      %p96 = por %p94, %p95
      %p97 = scmp.ne.s32.totalorder %s89, %s92
      %p98 = scmp.eq.s32.totalorder %s13, 0
      %p99 = por %p97, %p98
      %p100 = scmp.ne.s32.totalorder %s89, %s92
      %p101 = scmp.eq.s32.totalorder %s18, 3
      %p102 = por %p100, %p101
      %p103 = scmp.ne.s32.totalorder %s92, %s93
      %p104 = scmp.eq.s32.totalorder %s18, 0
      %p105 = por %p103, %p104
      %p106 = scmp.ne.s32.totalorder %s92, %s93
      %p107 = scmp.eq.s32.totalorder %s19, 3
      %p108 = por %p106, %p107
      %p110 = scmp.ne.s32.totalorder %s93, %s109
      %p111 = scmp.eq.s32.totalorder %s19, 0
      %p112 = por %p110, %p111
      %s114 = sadd.s32 %s113, 1
      %p117 = scmp.eq.s32.totalorder %s13, 3
      %p118 = scmp.ne.s32.totalorder %s113, %s115
      %p119 = scmp.eq.s32.totalorder %s13, 0
      %p120 = por %p118, %p119
      %p121 = scmp.ne.s32.totalorder %s113, %s115
      %p122 = scmp.eq.s32.totalorder %s18, 3
      %p123 = por %p121, %p122
      %p124 = scmp.ne.s32.totalorder %s115, %s116
      %p125 = scmp.eq.s32.totalorder %s18, 0
      %p126 = por %p124, %p125
      %p127 = scmp.ne.s32.totalorder %s115, %s116
      %p128 = scmp.eq.s32.totalorder %s19, 3
      %p129 = por %p127, %p128
      %p131 = scmp.ne.s32.totalorder %s116, %s130
      %p132 = scmp.eq.s32.totalorder %s19, 0
      %p133 = por %p131, %p132
      %s134 = ssub.s32 %s20, %s32
      %p135 = scmp.eq.s32.totalorder %s134, 0
      %s137 = sadd.s32 %s136, 1
      %s138 = scalar_select %p135, %s136, %s137
      %p141 = pneg %p135
      %p142 = scmp.eq.s32.totalorder %s13, 3
      %p143 = por %p141, %p142
      %p144 = scmp.ne.s32.totalorder %s136, %s139
      %p145 = scmp.eq.s32.totalorder %s13, 0
      %p146 = por %p144, %p145
      %p147 = scmp.ne.s32.totalorder %s136, %s139
      %p148 = scmp.eq.s32.totalorder %s18, 3
      %p149 = por %p147, %p148
      %p150 = scmp.ne.s32.totalorder %s139, %s140
      %p151 = scmp.eq.s32.totalorder %s18, 0
      %p152 = por %p150, %p151
      %p153 = scmp.ne.s32.totalorder %s139, %s140
      %p154 = scmp.eq.s32.totalorder %s19, 3
      %p155 = por %p153, %p154
      %p157 = scmp.ne.s32.totalorder %s140, %s156
      %p158 = scmp.eq.s32.totalorder %s19, 0
      %p159 = por %p157, %p158
      %p160 = scmp.le.s32.totalorder 1, %s13
      %p161 = scmp.lt.s32.totalorder %s13, 5
      %p162 = pnand %p160, %p161
      %p163 = pneg %p162
      // Predicated region
      $region9: #{tpu_custom_call.1} parent=5 // pred_check
        _
      $region10: #{tpu_custom_call.1} parent=5 // pred_check_branch
        %165 = sbr.rel (%p162) target = $region12
      $region11: #{tpu_custom_call.1} parent=5 // pred_region
        %s166 = ssub.s32 %s13, 1
        // Predicated region
        $region13: #{tpu_custom_call.1} parent=11 // pred_check
          %p167 = pneg %p105
        $region14: #{tpu_custom_call.1} parent=11 // pred_check_branch
          %169 = sbr.rel (%p167) target = $region16
        $region15: #{tpu_custom_call.1} parent=11 // pred_region
          %s170 = smul.u32 5, %s23
          %p171 = scmp.lt.s32.totalorder %s170, 4
          %s172 = scalar_select %p171, %s170, 4
          %s173 = smul.addr %s172, 4
          %s174 = scalar_lea.vmem %s2, %s173
          %s175 = smul.u32 5, %s23
        $region16: #{tpu_custom_call.1} parent=11 // pred_fallthru
          _
        // Predicated region
        $region17: #{tpu_custom_call.1} parent=11 // pred_check
          %p176 = pneg %p126
        $region18: #{tpu_custom_call.1} parent=11 // pred_check_branch
          %178 = sbr.rel (%p176) target = $region20
        $region19: #{tpu_custom_call.1} parent=11 // pred_region
          _
        $region20: #{tpu_custom_call.1} parent=11 // pred_fallthru
          _
      $region12: #{tpu_custom_call.1} parent=5 // pred_fallthru
        _
      %p179 = scmp.lt.s32.totalorder %s13, 4
      // Predicated region
      $region21: #{tpu_custom_call.1} parent=5 // pred_check
        %p180 = pneg %p179
      $region22: #{tpu_custom_call.1} parent=5 // pred_check_branch
        %182 = sbr.rel (%p180) target = $region24
      $region23: #{tpu_custom_call.1} parent=5 // pred_region
        // Predicated region
        $region25: #{tpu_custom_call.1} parent=23 // pred_check
          %p183 = pneg %p47
        $region26: #{tpu_custom_call.1} parent=23 // pred_check_branch
          %185 = sbr.rel (%p183) target = $region28
        $region27: #{tpu_custom_call.1} parent=23 // pred_region
          %s186 = smul.u32 16, %s20
          %p187 = scmp.lt.s32.totalorder %s186, 63
          %s188 = scalar_select %p187, %s186, 63
          %p189 = scmp.lt.s32.totalorder %s21, 0
          %s190 = scalar_select %p189, %s21, 0
          %s191 = sadd.s32 %s190, %s188
          %s192 = smul.addr %s191, 4
          %s193 = scalar_lea.vmem %s0, %s192
          %s194 = smul.u32 16, %s20
        $region28: #{tpu_custom_call.1} parent=23 // pred_fallthru
          _
        // Predicated region
        $region29: #{tpu_custom_call.1} parent=23 // pred_check
          %p195 = pneg %p73
        $region30: #{tpu_custom_call.1} parent=23 // pred_check_branch
          %197 = sbr.rel (%p195) target = $region32
        $region31: #{tpu_custom_call.1} parent=23 // pred_region
          %s198 = smul.u32 16, %s20
          %p199 = scmp.lt.s32.totalorder %s198, 63
          %s200 = scalar_select %p199, %s198, 63
          %s201 = smul.addr %s200, 8
          %s202 = scalar_lea.vmem %s1, %s201
          %s203 = smul.u32 16, %s20
        $region32: #{tpu_custom_call.1} parent=23 // pred_fallthru
          _
      $region24: #{tpu_custom_call.1} parent=5 // pred_fallthru
        _
      %p204 = scmp.le.s32.totalorder 1, %s13
      %p205 = scmp.lt.s32.totalorder %s13, 5
      %p206 = pnand %p204, %p205
      %p207 = pneg %p206
      // Predicated region
      $region33: #{tpu_custom_call.1} parent=5 // pred_check
        _
      $region34: #{tpu_custom_call.1} parent=5 // pred_check_branch
        %209 = sbr.rel (%p206) target = $region36
      $region35: #{tpu_custom_call.1} parent=5 // pred_region
        %s210 = ssub.s32 %s13, 1
        %s211 = smul.u32 16, %s22
        %p212 = scmp.lt.s32.totalorder %s211, 63
        %s213 = scalar_select %p212, %s211, 63
        %p214 = scmp.lt.s32.totalorder %s23, 0
        %s215 = scalar_select %p214, %s23, 0
        %s216 = sadd.s32 %s215, %s213
        %s217 = smul.addr %s216, 4
        %s218 = scalar_lea.vmem %s0, %s217
        %p219 = pneg %p53
        %p220 = pneg %p50
        %s221 = smul.u32 16, %s22
        %p222 = scmp.lt.s32.totalorder %s221, 63
        %s223 = scalar_select %p222, %s221, 63
        %s224 = smul.addr %s223, 8
        %s225 = scalar_lea.vmem %s1, %s224
        %p226 = pneg %p79
        %p227 = pneg %p76
        %s228 = smul.u32 5, %s23
        %p229 = scmp.lt.s32.totalorder %s228, 4
        %s230 = scalar_select %p229, %s228, 4
        %s231 = smul.addr %s230, 4
        %s232 = scalar_lea.vmem %s2, %s231
        %p233 = pneg %p105
        %p234 = pneg %p102
        %p235 = pneg %p126
        %p236 = pneg %p123
        %p237 = pneg %p152
        %p238 = pneg %p149
        %s239 = sand.u32 %s139, 1
        %s240 = scalar_lea.sflag [#allocation4], %s239
        %s241 = sand.u32 %s139, 1
        %s242 = smul.addr %s241, 64
        %s243 = scalar_lea.vmem [#allocation3], %s242
        %s244 = smul.u32 16, %s22
        %p245 = scmp.lt.s32.totalorder %s244, 63
        %s246 = scalar_select %p245, %s244, 63
        %p247 = scmp.lt.s32.totalorder %s23, 0
        %s248 = scalar_select %p247, %s23, 0
        %s249 = sadd.s32 %s248, %s246
        %s250 = smul.addr %s249, 4
        %s251 = scalar_lea.vmem %s0, %s250
        %s252 = smul.u32 16, %s22
        %s253 = smul.u32 16, %s22
        %p254 = scmp.lt.s32.totalorder %s253, 63
        %s255 = scalar_select %p254, %s253, 63
        %s256 = smul.addr %s255, 8
        %s257 = scalar_lea.vmem %s1, %s256
        %s258 = smul.u32 16, %s22
        %s259 = smul.u32 5, %s23
        %p260 = scmp.lt.s32.totalorder %s259, 4
        %s261 = scalar_select %p260, %s259, 4
        %s262 = smul.addr %s261, 4
        %s263 = scalar_lea.vmem %s2, %s262
        %s264 = smul.u32 5, %s23
        %s265 = smul.u32 16, %s22
        %p267 = scmp.eq.s32.totalorder %s23, 0
        // Predicated region
        $region37: #{tpu_custom_call.1} parent=35 // pred_check
          %p268 = pneg %p267
        $region38: #{tpu_custom_call.1} parent=35 // pred_check_branch
          %270 = sbr.rel (%p268) target = $region40
        $region39: #{tpu_custom_call.1} parent=35 // pred_region
          %271 = vst [vmem:[#allocation2] sm:$0xff] 0.0
          %272 = vst [vmem:[#allocation2 + $0x8] sm:$0xff] 0.0
          %273 = vst [vmem:[#allocation2 + $0x10] sm:$0xff] 0.0
          %274 = vst [vmem:[#allocation2 + $0x18] sm:$0xff] 0.0
          %275 = vst [vmem:[#allocation2 + $0x20] sm:$0xff] 0.0
          %276 = vst [vmem:[#allocation2 + $0x28] sm:$0xff] 0.0
          %277 = vst [vmem:[#allocation2 + $0x30] sm:$0xff] 0.0
          %278 = vst [vmem:[#allocation2 + $0x38] sm:$0xff] 0.0
          %279 = vst [vmem:[#allocation2 + $0x40] sm:$0xff] 0.0
          %280 = vst [vmem:[#allocation2 + $0x48] sm:$0xff] 0.0
          %281 = vst [vmem:[#allocation2 + $0x50] sm:$0xff] 0.0
          %282 = vst [vmem:[#allocation2 + $0x58] sm:$0xff] 0.0
          %283 = vst [vmem:[#allocation2 + $0x60] sm:$0xff] 0.0
          %284 = vst [vmem:[#allocation2 + $0x68] sm:$0xff] 0.0
          %285 = vst [vmem:[#allocation2 + $0x70] sm:$0xff] 0.0
          %286 = vst [vmem:[#allocation2 + $0x78] sm:$0xff] 0.0
        $region40: #{tpu_custom_call.1} parent=35 // pred_fallthru
          _
        %v287 = vld [vmem:[#allocation2] sm:$0xff]
        %v288 = vld [vmem:[#allocation2 + $0x8] sm:$0xff]
        %v289 = vld [vmem:[#allocation2 + $0x10] sm:$0xff]
        %v290 = vld [vmem:[#allocation2 + $0x18] sm:$0xff]
        %v291 = vld [vmem:[#allocation2 + $0x20] sm:$0xff]
        %v292 = vld [vmem:[#allocation2 + $0x28] sm:$0xff]
        %v293 = vld [vmem:[#allocation2 + $0x30] sm:$0xff]
        %v294 = vld [vmem:[#allocation2 + $0x38] sm:$0xff]
        %v295 = vld [vmem:[#allocation2 + $0x40] sm:$0xff]
        %v296 = vld [vmem:[#allocation2 + $0x48] sm:$0xff]
        %v297 = vld [vmem:[#allocation2 + $0x50] sm:$0xff]
        %v298 = vld [vmem:[#allocation2 + $0x58] sm:$0xff]
        %v299 = vld [vmem:[#allocation2 + $0x60] sm:$0xff]
        %v300 = vld [vmem:[#allocation2 + $0x68] sm:$0xff]
        %v301 = vld [vmem:[#allocation2 + $0x70] sm:$0xff]
        %v302 = vld [vmem:[#allocation2 + $0x78] sm:$0xff]
        %v303 = vld [vmem:[%s251] sm:$0xf]
        %v304 = vld [vmem:[%s251 + $0x4] sm:$0xf]
        %v305 = vld [vmem:[%s251 + $0x8] sm:$0xf]
        %v306 = vld [vmem:[%s251 + $0xc] sm:$0xf]
        %v307 = vld [vmem:[%s251 + $0x10] sm:$0xf]
        %v308 = vld [vmem:[%s251 + $0x14] sm:$0xf]
        %v309 = vld [vmem:[%s251 + $0x18] sm:$0xf]
        %v310 = vld [vmem:[%s251 + $0x1c] sm:$0xf]
        %v311 = vld [vmem:[%s251 + $0x20] sm:$0xf]
        %v312 = vld [vmem:[%s251 + $0x24] sm:$0xf]
        %v313 = vld [vmem:[%s251 + $0x28] sm:$0xf]
        %v314 = vld [vmem:[%s251 + $0x2c] sm:$0xf]
        %v315 = vld [vmem:[%s251 + $0x30] sm:$0xf]
        %v316 = vld [vmem:[%s251 + $0x34] sm:$0xf]
        %v317 = vld [vmem:[%s251 + $0x38] sm:$0xf]
        %v318 = vld [vmem:[%s251 + $0x3c] sm:$0xf]
        %v319 = vld [vmem:[%s263] sm:$0xf]
        %v320 = vld [vmem:[%s263 + $0x4] sm:$0xf]
        %v321 = vld [vmem:[%s263 + $0x8] sm:$0xf]
        %v322 = vld [vmem:[%s263 + $0xc] sm:$0xf]
        %v323 = vld [vmem:[%s263 + $0x10] sm:$0x3]
        %v340 = vunpack.c.l.b16 %v303
        %v341 = vunpack.c.l.b16 %v304
        %v342 = vunpack.c.l.b16 %v305
        %v343 = vunpack.c.l.b16 %v306
        %v344 = vunpack.c.l.b16 %v307
        %v345 = vunpack.c.l.b16 %v308
        %v346 = vunpack.c.l.b16 %v309
        %v347 = vunpack.c.l.b16 %v310
        %v348 = vunpack.c.l.b16 %v311
        %v349 = vunpack.c.l.b16 %v312
        %v350 = vunpack.c.l.b16 %v313
        %v351 = vunpack.c.l.b16 %v314
        %v352 = vunpack.c.l.b16 %v315
        %v353 = vunpack.c.l.b16 %v316
        %v354 = vunpack.c.l.b16 %v317
        %v355 = vunpack.c.l.b16 %v318
        %v356 = vpack.c.b16 %v341, %v340
        %v357 = vpack.c.b16 %v343, %v342
        %v358 = vpack.c.b16 %v345, %v344
        %v359 = vpack.c.b16 %v347, %v346
        %v360 = vpack.c.b16 %v349, %v348
        %v361 = vpack.c.b16 %v351, %v350
        %v362 = vpack.c.b16 %v353, %v352
        %v363 = vpack.c.b16 %v355, %v354
        %v369 = vunpack.c.l.b16 %v319
        %v370 = vunpack.c.l.b16 %v320
        %v371 = vunpack.c.l.b16 %v321
        %v372 = vunpack.c.l.b16 %v322
        %v373 = vunpack.c.l.b16 %v323
        %v374 = vpack.c.b16 %v370, %v369
        %v375 = vpack.c.b16 %v372, %v371
        %v376 = vpack.c.b16 %v373, %v373
        %vm379 = vcmask 293888
        %v381 = vsel %vm379, %v356, 0
        %v384 = vsel %vm379, %v357, 0
        %v387 = vsel %vm379, %v358, 0
        %v390 = vsel %vm379, %v359, 0
        %v393 = vsel %vm379, %v360, 0
        %v396 = vsel %vm379, %v361, 0
        %v399 = vsel %vm379, %v362, 0
        %v402 = vsel %vm379, %v363, 0
        %vm404 = vcmask 1041408
        %v406 = vsel %vm404, %v376, 0
        %408 = vmatprep.subr.bf16.mxu0 0
        %409 = vmatpush1.bf16.msra.mxu0 %v374
        %410 = vmatprep.subr.bf16.mxu0 0
        %411 = vmatpush1.bf16.msra.mxu0 %v375
        %412 = vmatprep.subr.bf16.mxu0 0
        %413 = vmatpush1.bf16.msra.mxu0 %v406
        %414 = vmatprep.subr.bf16.mxu0 0
        %415 = vmatpush1.bf16.msra.mxu0 0
        %416 = vmatprep.subr.bf16.mxu0 0
        %417 = vmatpush1.bf16.msra.mxu0 0
        %418 = vmatprep.subr.bf16.mxu0 0
        %419 = vmatpush1.bf16.msra.mxu0 0
        %420 = vmatprep.subr.bf16.mxu0 0
        %421 = vmatpush1.bf16.msra.mxu0 0
        %422 = vmatprep.subr.bf16.mxu0 0
        %423 = vmatpush1.bf16.msra.mxu0 0
        %424 = vmatprep.subr.bf16.mxu0 0
        %425 = vmatpush1.bf16.msra.mxu0 0
        %426 = vmatprep.subr.bf16.mxu0 0
        %427 = vmatpush1.bf16.msra.mxu0 0
        %428 = vmatprep.subr.bf16.mxu0 0
        %429 = vmatpush1.bf16.msra.mxu0 0
        %430 = vmatprep.subr.bf16.mxu0 0
        %431 = vmatpush1.bf16.msra.mxu0 0
        %432 = vmatprep.subr.bf16.mxu0 0
        %433 = vmatpush1.bf16.msra.mxu0 0
        %434 = vmatprep.subr.bf16.mxu0 0
        %435 = vmatpush1.bf16.msra.mxu0 0
        %436 = vmatprep.subr.bf16.mxu0 0
        %437 = vmatpush1.bf16.msra.mxu0 0
        %438 = vmatprep.subr.bf16.mxu0 0
        %439 = vmatpush1.bf16.msra.mxu0 0
        %440 = vmatprep.mubr.bf16.mxu0 0
        %441 = vmatmul.mubr.bf16.gmra.mrb[0].mxu0 %v381
        %v442 = vpop.f32.mrb[0].mxu0
        %v443 = vadd.f32 0.0, %v442
        %v444 = vpop.f32.mrb[0].mxu0
        %v445 = vpop.f32.mrb[0].mxu0
        %v446 = vadd.f32 0.0, %v445
        %v447 = vpop.f32.mrb[0].mxu0
        %448 = vmatprep.mubr.bf16.mxu0 0
        %449 = vmatmul.mubr.bf16.gmra.mrb[0].mxu0 %v384
        %v450 = vpop.f32.mrb[0].mxu0
        %v451 = vadd.f32 0.0, %v450
        %v452 = vpop.f32.mrb[0].mxu0
        %v453 = vpop.f32.mrb[0].mxu0
        %v454 = vadd.f32 0.0, %v453
        %v455 = vpop.f32.mrb[0].mxu0
        %456 = vmatprep.mubr.bf16.mxu0 0
        %457 = vmatmul.mubr.bf16.gmra.mrb[0].mxu0 %v387
        %v458 = vpop.f32.mrb[0].mxu0
        %v459 = vadd.f32 0.0, %v458
        %v460 = vpop.f32.mrb[0].mxu0
        %v461 = vpop.f32.mrb[0].mxu0
        %v462 = vadd.f32 0.0, %v461
        %v463 = vpop.f32.mrb[0].mxu0
        %464 = vmatprep.mubr.bf16.mxu0 0
        %465 = vmatmul.mubr.bf16.gmra.mrb[0].mxu0 %v390
        %v466 = vpop.f32.mrb[0].mxu0
        %v467 = vadd.f32 0.0, %v466
        %v468 = vpop.f32.mrb[0].mxu0
        %v469 = vpop.f32.mrb[0].mxu0
        %v470 = vadd.f32 0.0, %v469
        %v471 = vpop.f32.mrb[0].mxu0
        %472 = vmatprep.mubr.bf16.mxu0 0
        %473 = vmatmul.mubr.bf16.gmra.mrb[0].mxu0 %v393
        %v474 = vpop.f32.mrb[0].mxu0
        %v475 = vadd.f32 0.0, %v474
        %v476 = vpop.f32.mrb[0].mxu0
        %v477 = vpop.f32.mrb[0].mxu0
        %v478 = vadd.f32 0.0, %v477
        %v479 = vpop.f32.mrb[0].mxu0
        %480 = vmatprep.mubr.bf16.mxu0 0
        %481 = vmatmul.mubr.bf16.gmra.mrb[0].mxu0 %v396
        %v482 = vpop.f32.mrb[0].mxu0
        %v483 = vadd.f32 0.0, %v482
        %v484 = vpop.f32.mrb[0].mxu0
        %v485 = vpop.f32.mrb[0].mxu0
        %v486 = vadd.f32 0.0, %v485
        %v487 = vpop.f32.mrb[0].mxu0
        %488 = vmatprep.mubr.bf16.mxu0 0
        %489 = vmatmul.mubr.bf16.gmra.mrb[0].mxu0 %v399
        %v490 = vpop.f32.mrb[0].mxu0
        %v491 = vadd.f32 0.0, %v490
        %v492 = vpop.f32.mrb[0].mxu0
        %v493 = vpop.f32.mrb[0].mxu0
        %v494 = vadd.f32 0.0, %v493
        %v495 = vpop.f32.mrb[0].mxu0
        %496 = vmatprep.mubr.bf16.mxu0 0
        %497 = vmatmul.mubr.bf16.gmra.mrb[0].mxu0 %v402
        %v498 = vpop.f32.mrb[0].mxu0
        %v499 = vadd.f32 0.0, %v498
        %v500 = vpop.f32.mrb[0].mxu0
        %v501 = vpop.f32.mrb[0].mxu0
        %v502 = vadd.f32 0.0, %v501
        %v503 = vpop.f32.mrb[0].mxu0
        %504 = vdwg.mxu0
        %v505 = vadd.f32 %v287, %v443
        %v506 = vadd.f32 %v288, %v446
        %v507 = vadd.f32 %v289, %v451
        %v508 = vadd.f32 %v290, %v454
        %v509 = vadd.f32 %v291, %v459
        %v510 = vadd.f32 %v292, %v462
        %v511 = vadd.f32 %v293, %v467
        %v512 = vadd.f32 %v294, %v470
        %v513 = vadd.f32 %v295, %v475
        %v514 = vadd.f32 %v296, %v478
        %v515 = vadd.f32 %v297, %v483
        %v516 = vadd.f32 %v298, %v486
        %v517 = vadd.f32 %v299, %v491
        %v518 = vadd.f32 %v300, %v494
        %v519 = vadd.f32 %v301, %v499
        %v520 = vadd.f32 %v302, %v502
        %521 = vst [vmem:[#allocation2] sm:$0xff] %v505
        %522 = vst [vmem:[#allocation2 + $0x8] sm:$0xff] %v506
        %523 = vst [vmem:[#allocation2 + $0x10] sm:$0xff] %v507
        %524 = vst [vmem:[#allocation2 + $0x18] sm:$0xff] %v508
        %525 = vst [vmem:[#allocation2 + $0x20] sm:$0xff] %v509
        %526 = vst [vmem:[#allocation2 + $0x28] sm:$0xff] %v510
        %527 = vst [vmem:[#allocation2 + $0x30] sm:$0xff] %v511
        %528 = vst [vmem:[#allocation2 + $0x38] sm:$0xff] %v512
        %529 = vst [vmem:[#allocation2 + $0x40] sm:$0xff] %v513
        %530 = vst [vmem:[#allocation2 + $0x48] sm:$0xff] %v514
        %531 = vst [vmem:[#allocation2 + $0x50] sm:$0xff] %v515
        %532 = vst [vmem:[#allocation2 + $0x58] sm:$0xff] %v516
        %533 = vst [vmem:[#allocation2 + $0x60] sm:$0xff] %v517
        %534 = vst [vmem:[#allocation2 + $0x68] sm:$0xff] %v518
        %535 = vst [vmem:[#allocation2 + $0x70] sm:$0xff] %v519
        %536 = vst [vmem:[#allocation2 + $0x78] sm:$0xff] %v520
        // Predicated region
        $region41: #{tpu_custom_call.1} parent=35 // pred_check
          %p537 = pneg %p267
        $region42: #{tpu_custom_call.1} parent=35 // pred_check_branch
          %539 = sbr.rel (%p537) target = $region44
        $region43: #{tpu_custom_call.1} parent=35 // pred_region
          %v540 = vld [vmem:[%s257] sm:$0xff]
          %v541 = vld [vmem:[%s257 + $0x8] sm:$0xff]
          %v542 = vld [vmem:[%s257 + $0x10] sm:$0xff]
          %v543 = vld [vmem:[%s257 + $0x18] sm:$0xff]
          %v544 = vld [vmem:[%s257 + $0x20] sm:$0xff]
          %v545 = vld [vmem:[%s257 + $0x28] sm:$0xff]
          %v546 = vld [vmem:[%s257 + $0x30] sm:$0xff]
          %v547 = vld [vmem:[%s257 + $0x38] sm:$0xff]
          %v548 = vld [vmem:[%s257 + $0x40] sm:$0xff]
          %v549 = vld [vmem:[%s257 + $0x48] sm:$0xff]
          %v550 = vld [vmem:[%s257 + $0x50] sm:$0xff]
          %v551 = vld [vmem:[%s257 + $0x58] sm:$0xff]
          %v552 = vld [vmem:[%s257 + $0x60] sm:$0xff]
          %v553 = vld [vmem:[%s257 + $0x68] sm:$0xff]
          %v554 = vld [vmem:[%s257 + $0x70] sm:$0xff]
          %v555 = vld [vmem:[%s257 + $0x78] sm:$0xff]
          %v556 = vadd.f32 %v540, 1e-08
          %v557 = vadd.f32 %v541, 1e-08
          %v558 = vadd.f32 %v542, 1e-08
          %v559 = vadd.f32 %v543, 1e-08
          %v560 = vadd.f32 %v544, 1e-08
          %v561 = vadd.f32 %v545, 1e-08
          %v562 = vadd.f32 %v546, 1e-08
          %v563 = vadd.f32 %v547, 1e-08
          %v564 = vadd.f32 %v548, 1e-08
          %v565 = vadd.f32 %v549, 1e-08
          %v566 = vadd.f32 %v550, 1e-08
          %v567 = vadd.f32 %v551, 1e-08
          %v568 = vadd.f32 %v552, 1e-08
          %v569 = vadd.f32 %v553, 1e-08
          %v570 = vadd.f32 %v554, 1e-08
          %v571 = vadd.f32 %v555, 1e-08
          %v572 = vrcp.pop %v556
          %v573 = vrcp.pop %v557
          %v574 = vrcp.pop %v558
          %v575 = vrcp.pop %v559
          %v576 = vrcp.pop %v560
          %v577 = vrcp.pop %v561
          %v578 = vrcp.pop %v562
          %v579 = vrcp.pop %v563
          %v580 = vrcp.pop %v564
          %v581 = vrcp.pop %v565
          %v582 = vrcp.pop %v566
          %v583 = vrcp.pop %v567
          %v584 = vrcp.pop %v568
          %v585 = vrcp.pop %v569
          %v586 = vrcp.pop %v570
          %v587 = vrcp.pop %v571
          %v588 = vmul.f32 %v572, 36.0
          %v589 = vmul.f32 %v573, 36.0
          %v590 = vmul.f32 %v574, 36.0
          %v591 = vmul.f32 %v575, 36.0
          %v592 = vmul.f32 %v576, 36.0
          %v593 = vmul.f32 %v577, 36.0
          %v594 = vmul.f32 %v578, 36.0
          %v595 = vmul.f32 %v579, 36.0
          %v596 = vmul.f32 %v580, 36.0
          %v597 = vmul.f32 %v581, 36.0
          %v598 = vmul.f32 %v582, 36.0
          %v599 = vmul.f32 %v583, 36.0
          %v600 = vmul.f32 %v584, 36.0
          %v601 = vmul.f32 %v585, 36.0
          %v602 = vmul.f32 %v586, 36.0
          %v603 = vmul.f32 %v587, 36.0
          %v604 = vld [vmem:[#allocation2] sm:$0xff]
          %v605 = vld [vmem:[#allocation2 + $0x8] sm:$0xff]
          %v606 = vld [vmem:[#allocation2 + $0x10] sm:$0xff]
          %v607 = vld [vmem:[#allocation2 + $0x18] sm:$0xff]
          %v608 = vld [vmem:[#allocation2 + $0x20] sm:$0xff]
          %v609 = vld [vmem:[#allocation2 + $0x28] sm:$0xff]
          %v610 = vld [vmem:[#allocation2 + $0x30] sm:$0xff]
          %v611 = vld [vmem:[#allocation2 + $0x38] sm:$0xff]
          %v612 = vld [vmem:[#allocation2 + $0x40] sm:$0xff]
          %v613 = vld [vmem:[#allocation2 + $0x48] sm:$0xff]
          %v614 = vld [vmem:[#allocation2 + $0x50] sm:$0xff]
          %v615 = vld [vmem:[#allocation2 + $0x58] sm:$0xff]
          %v616 = vld [vmem:[#allocation2 + $0x60] sm:$0xff]
          %v617 = vld [vmem:[#allocation2 + $0x68] sm:$0xff]
          %v618 = vld [vmem:[#allocation2 + $0x70] sm:$0xff]
          %v619 = vld [vmem:[#allocation2 + $0x78] sm:$0xff]
          %621 = vset.pattern.permute.xlu0 0
          %622 = vperm.xlu0 %621, %v588
          %v623 = vpop.permute.xlu0 %622
          %626 = vset.pattern.permute.xlu0 0
          %627 = vperm.xlu0 %626, %v589
          %v628 = vpop.permute.xlu0 %627
          %631 = vset.pattern.permute.xlu0 0
          %632 = vperm.xlu0 %631, %v590
          %v633 = vpop.permute.xlu0 %632
          %636 = vset.pattern.permute.xlu0 0
          %637 = vperm.xlu0 %636, %v591
          %v638 = vpop.permute.xlu0 %637
          %641 = vset.pattern.permute.xlu0 0
          %642 = vperm.xlu0 %641, %v592
          %v643 = vpop.permute.xlu0 %642
          %646 = vset.pattern.permute.xlu0 0
          %647 = vperm.xlu0 %646, %v593
          %v648 = vpop.permute.xlu0 %647
          %651 = vset.pattern.permute.xlu0 0
          %652 = vperm.xlu0 %651, %v594
          %v653 = vpop.permute.xlu0 %652
          %656 = vset.pattern.permute.xlu0 0
          %657 = vperm.xlu0 %656, %v595
          %v658 = vpop.permute.xlu0 %657
          %661 = vset.pattern.permute.xlu0 0
          %662 = vperm.xlu0 %661, %v596
          %v663 = vpop.permute.xlu0 %662
          %666 = vset.pattern.permute.xlu0 0
          %667 = vperm.xlu0 %666, %v597
          %v668 = vpop.permute.xlu0 %667
          %671 = vset.pattern.permute.xlu0 0
          %672 = vperm.xlu0 %671, %v598
          %v673 = vpop.permute.xlu0 %672
          %676 = vset.pattern.permute.xlu0 0
          %677 = vperm.xlu0 %676, %v599
          %v678 = vpop.permute.xlu0 %677
          %681 = vset.pattern.permute.xlu0 0
          %682 = vperm.xlu0 %681, %v600
          %v683 = vpop.permute.xlu0 %682
          %686 = vset.pattern.permute.xlu0 0
          %687 = vperm.xlu0 %686, %v601
          %v688 = vpop.permute.xlu0 %687
          %691 = vset.pattern.permute.xlu0 0
          %692 = vperm.xlu0 %691, %v602
          %v693 = vpop.permute.xlu0 %692
          %696 = vset.pattern.permute.xlu0 0
          %697 = vperm.xlu0 %696, %v603
          %v698 = vpop.permute.xlu0 %697
          %v700 = vmul.f32 %v604, %v623
          %v701 = vmul.f32 %v605, %v628
          %v702 = vmul.f32 %v606, %v633
          %v703 = vmul.f32 %v607, %v638
          %v704 = vmul.f32 %v608, %v643
          %v705 = vmul.f32 %v609, %v648
          %v706 = vmul.f32 %v610, %v653
          %v707 = vmul.f32 %v611, %v658
          %v708 = vmul.f32 %v612, %v663
          %v709 = vmul.f32 %v613, %v668
          %v710 = vmul.f32 %v614, %v673
          %v711 = vmul.f32 %v615, %v678
          %v712 = vmul.f32 %v616, %v683
          %v713 = vmul.f32 %v617, %v688
          %v714 = vmul.f32 %v618, %v693
          %v715 = vmul.f32 %v619, %v698
          %v716 = vld [vmem:[%s3] sm:$0x1]
          %v718 = vlaneseq
          %v719 = vshrl.u32 %v718, 7
          %v720 = vsub.s32 0, %v719
          %v721 = vrot.slane %v716, %v720
          %v723 = vadd.f32 %v700, %v721
          %v724 = vadd.f32 %v701, %v721
          %v725 = vadd.f32 %v702, %v721
          %v726 = vadd.f32 %v703, %v721
          %v727 = vadd.f32 %v704, %v721
          %v728 = vadd.f32 %v705, %v721
          %v729 = vadd.f32 %v706, %v721
          %v730 = vadd.f32 %v707, %v721
          %v731 = vadd.f32 %v708, %v721
          %v732 = vadd.f32 %v709, %v721
          %v733 = vadd.f32 %v710, %v721
          %v734 = vadd.f32 %v711, %v721
          %v735 = vadd.f32 %v712, %v721
          %v736 = vadd.f32 %v713, %v721
          %v737 = vadd.f32 %v714, %v721
          %v738 = vadd.f32 %v715, %v721
          %v739 = vpack.c.bf16 %v724, %v723
          %v740 = vpack.c.bf16 %v726, %v725
          %v741 = vpack.c.bf16 %v728, %v727
          %v742 = vpack.c.bf16 %v730, %v729
          %v743 = vpack.c.bf16 %v732, %v731
          %v744 = vpack.c.bf16 %v734, %v733
          %v745 = vpack.c.bf16 %v736, %v735
          %v746 = vpack.c.bf16 %v738, %v737
          %v755 = vunpack.c.l.b16 %v739
          %v756 = vunpack.c.h.b16 %v739
          %v757 = vunpack.c.l.b16 %v740
          %v758 = vunpack.c.h.b16 %v740
          %v759 = vunpack.c.l.b16 %v741
          %v760 = vunpack.c.h.b16 %v741
          %v761 = vunpack.c.l.b16 %v742
          %v762 = vunpack.c.h.b16 %v742
          %v763 = vunpack.c.l.b16 %v743
          %v764 = vunpack.c.h.b16 %v743
          %v765 = vunpack.c.l.b16 %v744
          %v766 = vunpack.c.h.b16 %v744
          %v767 = vunpack.c.l.b16 %v745
          %v768 = vunpack.c.h.b16 %v745
          %v769 = vunpack.c.l.b16 %v746
          %v770 = vunpack.c.h.b16 %v746
          %v771 = vpack.c.b16 %v755, %v755
          %v772 = vpack.c.b16 %v756, %v756
          %v773 = vpack.c.b16 %v757, %v757
          %v774 = vpack.c.b16 %v758, %v758
          %v775 = vpack.c.b16 %v759, %v759
          %v776 = vpack.c.b16 %v760, %v760
          %v777 = vpack.c.b16 %v761, %v761
          %v778 = vpack.c.b16 %v762, %v762
          %v779 = vpack.c.b16 %v763, %v763
          %v780 = vpack.c.b16 %v764, %v764
          %v781 = vpack.c.b16 %v765, %v765
          %v782 = vpack.c.b16 %v766, %v766
          %v783 = vpack.c.b16 %v767, %v767
          %v784 = vpack.c.b16 %v768, %v768
          %v785 = vpack.c.b16 %v769, %v769
          %v786 = vpack.c.b16 %v770, %v770
          %803 = vst [vmem:[%s243] sm:$0xf] %v771
          %804 = vst [vmem:[%s243 + $0x4] sm:$0xf] %v772
          %805 = vst [vmem:[%s243 + $0x8] sm:$0xf] %v773
          %806 = vst [vmem:[%s243 + $0xc] sm:$0xf] %v774
          %807 = vst [vmem:[%s243 + $0x10] sm:$0xf] %v775
          %808 = vst [vmem:[%s243 + $0x14] sm:$0xf] %v776
          %809 = vst [vmem:[%s243 + $0x18] sm:$0xf] %v777
          %810 = vst [vmem:[%s243 + $0x1c] sm:$0xf] %v778
          %811 = vst [vmem:[%s243 + $0x20] sm:$0xf] %v779
          %812 = vst [vmem:[%s243 + $0x24] sm:$0xf] %v780
          %813 = vst [vmem:[%s243 + $0x28] sm:$0xf] %v781
          %814 = vst [vmem:[%s243 + $0x2c] sm:$0xf] %v782
          %815 = vst [vmem:[%s243 + $0x30] sm:$0xf] %v783
          %816 = vst [vmem:[%s243 + $0x34] sm:$0xf] %v784
          %817 = vst [vmem:[%s243 + $0x38] sm:$0xf] %v785
          %818 = vst [vmem:[%s243 + $0x3c] sm:$0xf] %v786
        $region44: #{tpu_custom_call.1} parent=35 // pred_fallthru
          _
        %s819 = sand.u32 %s139, 1
        %s820 = scalar_lea.sflag [#allocation4], %s819
        %s821 = sand.u32 %s139, 1
        %s822 = smul.addr %s821, 64
        %s823 = scalar_lea.vmem [#allocation3], %s822
        // Predicated region
        $region45: #{tpu_custom_call.1} parent=35 // pred_check
          %p824 = pneg %p149
        $region46: #{tpu_custom_call.1} parent=35 // pred_check_branch
          %826 = sbr.rel (%p824) target = $region48
        $region47: #{tpu_custom_call.1} parent=35 // pred_region
          %s827 = smul.u32 16, %s22
          %s829 = ssub.s32 1024, 1024
          %830 = vsyncadd %s820, %s829
          %s831 = smul.addr %s827, 64
          %s832 = scalar_lea.hbm %s4, %s831
          %s833 = sshll.u32 %s823, 4
          %s834 = int_to_ptr.vmem [resolvable:$true] %s833
          %839 = dma.vmem_to_hbm [thread:$0]  %s834, 1024, %s832, %s820, 64, 64, 4
        $region48: #{tpu_custom_call.1} parent=35 // pred_fallthru
          _
      $region36: #{tpu_custom_call.1} parent=5 // pred_fallthru
        _
      %p840 = scmp.le.s32.totalorder 2, %s13
      // Predicated region
      $region49: #{tpu_custom_call.1} parent=5 // pred_check
        %p841 = pneg %p840
      $region50: #{tpu_custom_call.1} parent=5 // pred_check_branch
        %843 = sbr.rel (%p841) target = $region52
      $region51: #{tpu_custom_call.1} parent=5 // pred_region
        %s844 = ssub.s32 %s13, 2
        // Predicated region
        $region53: #{tpu_custom_call.1} parent=51 // pred_check
          %p845 = pneg %p155
        $region54: #{tpu_custom_call.1} parent=51 // pred_check_branch
          %847 = sbr.rel (%p845) target = $region56
        $region55: #{tpu_custom_call.1} parent=51 // pred_region
          %s848 = sand.u32 %s140, 1
          %s849 = scalar_lea.sflag [#allocation4], %s848
          %s850 = sand.u32 %s140, 1
          %s851 = smul.addr %s850, 64
          %s852 = scalar_lea.vmem [#allocation3], %s851
          %853 = dma.done %s849, 1024
        $region56: #{tpu_custom_call.1} parent=51 // pred_fallthru
          _
      $region52: #{tpu_custom_call.1} parent=5 // pred_fallthru
        _
    $region6: #{tpu_custom_call.1} parent=1 // loop_footer
      %s17 = sadd.s32 1, %s13
    $region7: #{tpu_custom_call.1} parent=1 // loop_footer_branch
      %12 = sbr.rel target = $region3
    $region8: #{tpu_custom_call.1} parent=1 // loop_exit
      _
    %854 = vsyncpa [#allocation4], 1
    %s855 = scalar_lea.sflag [#allocation4], 1
    %856 = vsyncpa %s855, 1

</llo_original>
